<compile_context>
chip_gen: v6e
topology: v6e:2x2x1
jax: 0.10.0
libtpu: 0.0.40
codegen_flags: <defaults>
</compile_context>

<pallas_src>
import jax
import jax.numpy as jnp
from jax.experimental import pallas as pl
from jax.experimental.pallas import tpu as pltpu


def _nested_kernel(x_ref, wet_ref, bet_ref, wht_ref, bht_ref, wxt_ref, bxt_ref,
                   o_ref):
    # x is a lane-dense (C, thw) tile: channels on sublanes, spatial on lanes.
    x = x_ref[...].astype(jnp.float32)                       # skip tensor
    # --- enter: 1x1 conv C -> CMID, ReLU; skip = x ---
    h = jnp.dot(wet_ref[...], x, preferred_element_type=jnp.float32)
    h = jnp.maximum(h + bet_ref[...], 0.0)                   # (CMID, thw)
    # --- hole: 1x1 conv CMID -> CMID, ReLU ---
    h = jnp.dot(wht_ref[...], h, preferred_element_type=jnp.float32)
    h = jnp.maximum(h + bht_ref[...], 0.0)                   # (CMID, thw)
    # --- exit: 1x1 conv CMID -> C, add skip, ReLU ---
    y = jnp.dot(wxt_ref[...], h, preferred_element_type=jnp.float32)
    y = y + bxt_ref[...] + x                                  # (C, thw)
    o_ref[...] = jnp.maximum(y, 0.0).astype(o_ref.dtype)


def _choose_lane_tile(hw, max_tile):
    """Largest lane tile that is a multiple of 128 and divides hw."""
    if hw % 128 != 0 or hw <= max_tile:
        # Odd spatial sizes fall back to one full-extent lane tile per sample
        # (fine at the small shapes this module is used with).
        return hw
    t = (max_tile // 128) * 128
    while hw % t != 0:
        t -= 128
    return t


def nested_forward(x_nchw, params, *, max_lane_tile=2048):
    we, be, wh, bh, wx, bx = params
    n, c, h, w = x_nchw.shape
    cmid = we.shape[1]
    hw = h * w

    # NCHW-native: pure reshape, no elementwise transpose in HBM.
    x3d = x_nchw.reshape(n, c, hw)
    thw = _choose_lane_tile(hw, max_lane_tile)
    grid = (n, hw // thw)

    # Pre-transpose the (tiny) weights so each stage is W^T @ x; biases become
    # (channels, 1) columns broadcast along the lane axis.
    wet = we.T                           # (CMID, C)
    wht = wh.T                           # (CMID, CMID)
    wxt = wx.T                           # (C, CMID)
    bet = be.reshape(cmid, 1)
    bht = bh.reshape(cmid, 1)
    bxt = bx.reshape(c, 1)

    flops = 2 * n * hw * (c * cmid + cmid * cmid + cmid * c)
    bytes_accessed = 4 * (2 * n * c * hw                       # x in + out
                          + 2 * c * cmid + cmid * cmid         # weights
                          + 2 * cmid + c)                      # biases

    out3d = pl.pallas_call(
        _nested_kernel,
        out_shape=jax.ShapeDtypeStruct((n, c, hw), x_nchw.dtype),
        grid_spec=pltpu.PrefetchScalarGridSpec(
            num_scalar_prefetch=0,
            grid=grid,
            in_specs=[
                # x: batch squeezed, channels on sublanes, lane-dense spatial.
                pl.BlockSpec((None, c, thw), lambda i, j: (i, 0, j)),
                pl.BlockSpec((cmid, c), lambda i, j: (0, 0)),     # W_enter^T
                pl.BlockSpec((cmid, 1), lambda i, j: (0, 0)),     # b_enter
                pl.BlockSpec((cmid, cmid), lambda i, j: (0, 0)),  # W_hole^T
                pl.BlockSpec((cmid, 1), lambda i, j: (0, 0)),     # b_hole
                pl.BlockSpec((c, cmid), lambda i, j: (0, 0)),     # W_exit^T
                pl.BlockSpec((c, 1), lambda i, j: (0, 0)),        # b_exit
            ],
            out_specs=pl.BlockSpec((None, c, thw), lambda i, j: (i, 0, j)),
        ),
        compiler_params=pltpu.CompilerParams(
            dimension_semantics=("parallel", "parallel")),
        cost_estimate=pl.CostEstimate(
            flops=flops, transcendentals=0, bytes_accessed=bytes_accessed),
    )(x3d, wet, bet, wht, bht, wxt, bxt)

    return out3d.reshape(n, c, h, w)


def _reference(x_nchw, params):
    """Pure-JAX reference of the same NestedModule forward."""
    we, be, wh, bh, wx, bx = params
    n, c, hh, ww = x_nchw.shape
    x2d = jnp.transpose(x_nchw, (0, 2, 3, 1)).reshape(-1, c).astype(jnp.float32)
    skip = x2d
    out = jax.nn.relu(x2d @ we + be)          # enter
    out = jax.nn.relu(out @ wh + bh)          # hole
    out = jax.nn.relu(out @ wx + bx + skip)   # exit
    return out.reshape(n, hh, ww, c).transpose(0, 3, 1, 2)


if __name__ == "__main__":
    key = jax.random.PRNGKey(0)
    kx, k1, k2, k3, k4, k5, k6 = jax.random.split(key, 7)

    N, C, H, W = 2, 4, 16, 16       # small NCHW input, per the module's conv conventions
    CMID = 8                        # bottleneck ("hole") channel width

    x = jax.random.normal(kx, (N, C, H, W), dtype=jnp.float32)
    params = (
        0.1 * jax.random.normal(k1, (C, CMID), dtype=jnp.float32),     # W_enter
        0.1 * jax.random.normal(k2, (1, CMID), dtype=jnp.float32),     # b_enter
        0.1 * jax.random.normal(k3, (CMID, CMID), dtype=jnp.float32),  # W_hole
        0.1 * jax.random.normal(k4, (1, CMID), dtype=jnp.float32),     # b_hole
        0.1 * jax.random.normal(k5, (CMID, C), dtype=jnp.float32),     # W_exit
        0.1 * jax.random.normal(k6, (1, C), dtype=jnp.float32),        # b_exit
    )

    out = jax.jit(nested_forward)(x, params)
    jax.block_until_ready(out)

    ref = _reference(x, params)
    assert out.shape == (N, C, H, W)
    assert jnp.allclose(out, ref, atol=1e-4, rtol=1e-4)
    print("KERNEL_OK")
</pallas_src>

<mosaic_0001>
module attributes {stable_mosaic.version = 11 : i64} {
  func.func @_nested_kernel(%arg0: i32, %arg1: i32, %arg2: memref<1x4x256xf32, #tpu.memory_space<vmem>>, %arg3: memref<8x4xf32, #tpu.memory_space<vmem>>, %arg4: memref<8x1xf32, #tpu.memory_space<vmem>>, %arg5: memref<8x8xf32, #tpu.memory_space<vmem>>, %arg6: memref<8x1xf32, #tpu.memory_space<vmem>>, %arg7: memref<4x8xf32, #tpu.memory_space<vmem>>, %arg8: memref<4x1xf32, #tpu.memory_space<vmem>>, %arg9: memref<1x4x256xf32, #tpu.memory_space<vmem>>) attributes {dimension_semantics = [#tpu.dimension_semantics<parallel>, #tpu.dimension_semantics<parallel>], iteration_bounds = array<i64: 2, 1>, scalar_prefetch = 0 : i64, scratch_operands = 0 : i64, tpu.core_type = #tpu.core_type<tc>, window_params = [{transform_indices = @transform_0, window_bounds = array<i64: 1, 4, 256>}, {pipeline_mode = #tpu.pipeline_mode<synchronous>, transform_indices = @transform_1, window_bounds = array<i64: 8, 4>}, {pipeline_mode = #tpu.pipeline_mode<synchronous>, transform_indices = @transform_2, window_bounds = array<i64: 8, 1>}, {pipeline_mode = #tpu.pipeline_mode<synchronous>, transform_indices = @transform_3, window_bounds = array<i64: 8, 8>}, {pipeline_mode = #tpu.pipeline_mode<synchronous>, transform_indices = @transform_4, window_bounds = array<i64: 8, 1>}, {pipeline_mode = #tpu.pipeline_mode<synchronous>, transform_indices = @transform_5, window_bounds = array<i64: 4, 8>}, {pipeline_mode = #tpu.pipeline_mode<synchronous>, transform_indices = @transform_6, window_bounds = array<i64: 4, 1>}, {transform_indices = @transform_7, window_bounds = array<i64: 1, 4, 256>}]} {
    %c0 = arith.constant 0 : index
    %c0_0 = arith.constant 0 : index
    %c0_1 = arith.constant 0 : index
    %0 = vector.load %arg2[%c0, %c0_0, %c0_1] : memref<1x4x256xf32, #tpu.memory_space<vmem>>, vector<1x4x256xf32>
    %1 = vector.shape_cast %0 : vector<1x4x256xf32> to vector<4x256xf32>
    %c0_2 = arith.constant 0 : index
    %c0_3 = arith.constant 0 : index
    %2 = vector.load %arg3[%c0_2, %c0_3] : memref<8x4xf32, #tpu.memory_space<vmem>>, vector<8x4xf32>
    %cst = arith.constant dense<0.000000e+00> : vector<8x256xf32>
    %3 = tpu.matmul %2, %1, %cst {dimension_numbers = #tpu.dot_dimension_numbers<[1], [0], [0], [1], [0, 0, 1, 1], [], []>} : vector<8x4xf32>, vector<4x256xf32>, vector<8x256xf32> -> vector<8x256xf32>
    %c0_4 = arith.constant 0 : index
    %c0_5 = arith.constant 0 : index
    %4 = vector.load %arg4[%c0_4, %c0_5] : memref<8x1xf32, #tpu.memory_space<vmem>>, vector<8x1xf32>
    %5 = vector.broadcast %4 : vector<8x1xf32> to vector<8x256xf32>
    %6 = arith.addf %3, %5 : vector<8x256xf32>
    %cst_6 = arith.constant 0.000000e+00 : f32
    %7 = vector.broadcast %cst_6 : f32 to vector<8x256xf32>
    %8 = arith.maximumf %6, %7 : vector<8x256xf32>
    %c0_7 = arith.constant 0 : index
    %c0_8 = arith.constant 0 : index
    %9 = vector.load %arg5[%c0_7, %c0_8] : memref<8x8xf32, #tpu.memory_space<vmem>>, vector<8x8xf32>
    %cst_9 = arith.constant dense<0.000000e+00> : vector<8x256xf32>
    %10 = tpu.matmul %9, %8, %cst_9 {dimension_numbers = #tpu.dot_dimension_numbers<[1], [0], [0], [1], [0, 0, 1, 1], [], []>} : vector<8x8xf32>, vector<8x256xf32>, vector<8x256xf32> -> vector<8x256xf32>
    %c0_10 = arith.constant 0 : index
    %c0_11 = arith.constant 0 : index
    %11 = vector.load %arg6[%c0_10, %c0_11] : memref<8x1xf32, #tpu.memory_space<vmem>>, vector<8x1xf32>
    %12 = vector.broadcast %11 : vector<8x1xf32> to vector<8x256xf32>
    %13 = arith.addf %10, %12 : vector<8x256xf32>
    %cst_12 = arith.constant 0.000000e+00 : f32
    %14 = vector.broadcast %cst_12 : f32 to vector<8x256xf32>
    %15 = arith.maximumf %13, %14 : vector<8x256xf32>
    %c0_13 = arith.constant 0 : index
    %c0_14 = arith.constant 0 : index
    %16 = vector.load %arg7[%c0_13, %c0_14] : memref<4x8xf32, #tpu.memory_space<vmem>>, vector<4x8xf32>
    %cst_15 = arith.constant dense<0.000000e+00> : vector<4x256xf32>
    %17 = tpu.matmul %16, %15, %cst_15 {dimension_numbers = #tpu.dot_dimension_numbers<[1], [0], [0], [1], [0, 0, 1, 1], [], []>} : vector<4x8xf32>, vector<8x256xf32>, vector<4x256xf32> -> vector<4x256xf32>
    %c0_16 = arith.constant 0 : index
    %c0_17 = arith.constant 0 : index
    %18 = vector.load %arg8[%c0_16, %c0_17] : memref<4x1xf32, #tpu.memory_space<vmem>>, vector<4x1xf32>
    %19 = vector.broadcast %18 : vector<4x1xf32> to vector<4x256xf32>
    %20 = arith.addf %17, %19 : vector<4x256xf32>
    %21 = arith.addf %20, %1 : vector<4x256xf32>
    %cst_18 = arith.constant 0.000000e+00 : f32
    %22 = vector.broadcast %cst_18 : f32 to vector<4x256xf32>
    %23 = arith.maximumf %21, %22 : vector<4x256xf32>
    %c0_19 = arith.constant 0 : index
    %c0_20 = arith.constant 0 : index
    %c0_21 = arith.constant 0 : index
    %24 = vector.load %arg9[%c0_19, %c0_20, %c0_21] : memref<1x4x256xf32, #tpu.memory_space<vmem>>, vector<1x4x256xf32>
    %25 = vector.shape_cast %24 : vector<1x4x256xf32> to vector<4x256xf32>
    %26 = vector.shape_cast %23 : vector<4x256xf32> to vector<1x4x256xf32>
    tpu.vector_store %arg9[%c0_19, %c0_20, %c0_21], %26 {strides = array<i32>} : memref<1x4x256xf32, #tpu.memory_space<vmem>>, vector<1x4x256xf32>,
    return
  }
  func.func @transform_0(%arg0: i32, %arg1: i32) -> (i32, i32, i32) {
    %c0_i32 = arith.constant 0 : i32
    %c0_i32_0 = arith.constant 0 : i32
    return %arg0, %c0_i32, %arg1 : i32, i32, i32
  }
  func.func @transform_1(%arg0: i32, %arg1: i32) -> (i32, i32) {
    %c0_i32 = arith.constant 0 : i32
    %c0_i32_0 = arith.constant 0 : i32
    %c0_i32_1 = arith.constant 0 : i32
    return %c0_i32, %c0_i32_0 : i32, i32
  }
  func.func @transform_2(%arg0: i32, %arg1: i32) -> (i32, i32) {
    %c0_i32 = arith.constant 0 : i32
    %c0_i32_0 = arith.constant 0 : i32
    %c0_i32_1 = arith.constant 0 : i32
    return %c0_i32, %c0_i32_0 : i32, i32
  }
  func.func @transform_3(%arg0: i32, %arg1: i32) -> (i32, i32) {
    %c0_i32 = arith.constant 0 : i32
    %c0_i32_0 = arith.constant 0 : i32
    %c0_i32_1 = arith.constant 0 : i32
    return %c0_i32, %c0_i32_0 : i32, i32
  }
  func.func @transform_4(%arg0: i32, %arg1: i32) -> (i32, i32) {
    %c0_i32 = arith.constant 0 : i32
    %c0_i32_0 = arith.constant 0 : i32
    %c0_i32_1 = arith.constant 0 : i32
    return %c0_i32, %c0_i32_0 : i32, i32
  }
  func.func @transform_5(%arg0: i32, %arg1: i32) -> (i32, i32) {
    %c0_i32 = arith.constant 0 : i32
    %c0_i32_0 = arith.constant 0 : i32
    %c0_i32_1 = arith.constant 0 : i32
    return %c0_i32, %c0_i32_0 : i32, i32
  }
  func.func @transform_6(%arg0: i32, %arg1: i32) -> (i32, i32) {
    %c0_i32 = arith.constant 0 : i32
    %c0_i32_0 = arith.constant 0 : i32
    %c0_i32_1 = arith.constant 0 : i32
    return %c0_i32, %c0_i32_0 : i32, i32
  }
  func.func @transform_7(%arg0: i32, %arg1: i32) -> (i32, i32, i32) {
    %c0_i32 = arith.constant 0 : i32
    %c0_i32_0 = arith.constant 0 : i32
    return %arg0, %c0_i32, %arg1 : i32, i32, i32
  }
}

</mosaic_0001>

<llo_original>
// kernel: nested_forward.1
$region0: #{nested_forward.1}
  #allocation0 [shape = 'u32[]', space=smem, size = 0x4, offset = 0x4, fixed_abs, tag = 'smem constant byte address 0x4 - core index']
  #allocation1 [shape = 'u32[144,128]{1,0:T(1,128)}', space=vmem, size = 0x12000, scoped, tag = 'internal scratch']
  %s0 = inlined_call_operand.vmem [shape: f32[2,4,256], index: 0, kind: input, shape index: {}]
  %s1 = inlined_call_operand.vmem [shape: f32[8,4], index: 1, kind: input, shape index: {}]
  %s2 = inlined_call_operand.vmem [shape: f32[8,1], index: 2, kind: input, shape index: {}]
  %s3 = inlined_call_operand.vmem [shape: f32[8,8], index: 3, kind: input, shape index: {}]
  %s4 = inlined_call_operand.vmem [shape: f32[8,1], index: 4, kind: input, shape index: {}]
  %s5 = inlined_call_operand.vmem [shape: f32[4,8], index: 5, kind: input, shape index: {}]
  %s6 = inlined_call_operand.vmem [shape: f32[4,1], index: 6, kind: input, shape index: {}]
  %s7 = inlined_call_operand.vmem [shape: f32[2,4,256], index: 7, kind: output, shape index: {}]
  %s8 = sld [smem:[#allocation0]]
  $region61: #{nested_forward.1} parent=0
    _
  %s10 = ssub.s32 1, %s8
  %s11 = scalar_select 0, %s10, %s8
  loop: start=0, step=1, limit=4
  $region2: #{nested_forward.1} parent=0 // loop_pre_header
    _
  $region3: #{nested_forward.1} parent=0 // loop_header
    %s13 = sphi 0, %s17
    %p14 = scmp.ge.s32.totalorder %s13, 4
    %s20 = sphi 0, %s32
    %s21 = sphi 0, %s28
    %s22 = sphi 0, %s20
    %s23 = sphi 0, %s21
    %s24 = sphi 0, %s22
    %s25 = sphi 0, %s23
    %s37 = sphi 0, %s39
    %s40 = sphi 0, %s37
    %s41 = sphi 0, %s40
    %s57 = sphi 0, %s41
    %s61 = sphi 0, %s61
    %s63 = sphi 0, %s61
    %s64 = sphi 0, %s63
    %s78 = sphi 0, %s64
    %s82 = sphi 0, %s82
    %s84 = sphi 0, %s82
    %s85 = sphi 0, %s84
    %s99 = sphi 0, %s85
    %s103 = sphi 0, %s103
    %s105 = sphi 0, %s103
    %s106 = sphi 0, %s105
    %s120 = sphi 0, %s106
    %s124 = sphi 0, %s124
    %s126 = sphi 0, %s124
    %s127 = sphi 0, %s126
    %s141 = sphi 0, %s127
    %s145 = sphi 0, %s145
    %s147 = sphi 0, %s145
    %s148 = sphi 0, %s147
    %s162 = sphi 0, %s148
    %s166 = sphi 0, %s166
    %s168 = sphi 0, %s166
    %s169 = sphi 0, %s168
    %s183 = sphi 0, %s169
    %s191 = sphi 0, %s193
    %s194 = sphi 0, %s191
    %s195 = sphi 0, %s194
    %s211 = sphi 0, %s195
  $region4: #{nested_forward.1} parent=0 // loop_header_branch
    %16 = sbr.rel (%p14) target = $region8
  $region5: #{nested_forward.1} parent=0 // loop_body
    %s18 = ssub.s32 %s13, 1
    %s19 = ssub.s32 %s13, 2
    %s26 = sadd.s32 1, %s21
    %p27 = scmp.ge.s32.totalorder %s26, 1
    %s28 = scalar_select %p27, 0, %s26
    %s29 = sadd.s32 1, %s20
    %s30 = scalar_select %p27, %s29, %s20
    %p31 = scmp.ge.s32.totalorder %s30, 2
    %s32 = scalar_select %p31, 0, %s30
    %s33 = ssub.s32 %s20, %s32
    %s34 = ssub.s32 %s21, %s28
    %s35 = sor.u32 %s33, %s34
    %p36 = scmp.eq.s32.totalorder %s35, 0
    %s38 = sadd.s32 %s37, 1
    %s39 = scalar_select %p36, %s37, %s38
    %p42 = pneg %p36
    %p43 = scmp.eq.s32.totalorder %s13, 1
    %p44 = por %p42, %p43
    %p45 = scmp.ne.s32.totalorder %s37, %s40
    %p46 = scmp.eq.s32.totalorder %s13, 0
    %p47 = por %p45, %p46
    %p48 = scmp.ne.s32.totalorder %s37, %s40
    %p49 = scmp.eq.s32.totalorder %s18, 1
    %p50 = por %p48, %p49
    %p51 = scmp.ne.s32.totalorder %s40, %s41
    %p52 = scmp.eq.s32.totalorder %s18, 0
    %p53 = por %p51, %p52
    %p54 = scmp.ne.s32.totalorder %s40, %s41
    %p55 = scmp.eq.s32.totalorder %s19, 1
    %p56 = por %p54, %p55
    %p58 = scmp.ne.s32.totalorder %s41, %s57
    %p59 = scmp.eq.s32.totalorder %s19, 0
    %p60 = por %p58, %p59
    %s62 = sadd.s32 %s61, 1
    %p65 = scmp.eq.s32.totalorder %s13, 1
    %p66 = scmp.ne.s32.totalorder %s61, %s63
    %p67 = scmp.eq.s32.totalorder %s13, 0
    %p68 = por %p66, %p67
    %p69 = scmp.ne.s32.totalorder %s61, %s63
    %p70 = scmp.eq.s32.totalorder %s18, 1
    %p71 = por %p69, %p70
    %p72 = scmp.ne.s32.totalorder %s63, %s64
    %p73 = scmp.eq.s32.totalorder %s18, 0
    %p74 = por %p72, %p73
    %p75 = scmp.ne.s32.totalorder %s63, %s64
    %p76 = scmp.eq.s32.totalorder %s19, 1
    %p77 = por %p75, %p76
    %p79 = scmp.ne.s32.totalorder %s64, %s78
    %p80 = scmp.eq.s32.totalorder %s19, 0
    %p81 = por %p79, %p80
    %s83 = sadd.s32 %s82, 1
    %p86 = scmp.eq.s32.totalorder %s13, 1
    %p87 = scmp.ne.s32.totalorder %s82, %s84
    %p88 = scmp.eq.s32.totalorder %s13, 0
    %p89 = por %p87, %p88
    %p90 = scmp.ne.s32.totalorder %s82, %s84
    %p91 = scmp.eq.s32.totalorder %s18, 1
    %p92 = por %p90, %p91
    %p93 = scmp.ne.s32.totalorder %s84, %s85
    %p94 = scmp.eq.s32.totalorder %s18, 0
    %p95 = por %p93, %p94
    %p96 = scmp.ne.s32.totalorder %s84, %s85
    %p97 = scmp.eq.s32.totalorder %s19, 1
    %p98 = por %p96, %p97
    %p100 = scmp.ne.s32.totalorder %s85, %s99
    %p101 = scmp.eq.s32.totalorder %s19, 0
    %p102 = por %p100, %p101
    %s104 = sadd.s32 %s103, 1
    %p107 = scmp.eq.s32.totalorder %s13, 1
    %p108 = scmp.ne.s32.totalorder %s103, %s105
    %p109 = scmp.eq.s32.totalorder %s13, 0
    %p110 = por %p108, %p109
    %p111 = scmp.ne.s32.totalorder %s103, %s105
    %p112 = scmp.eq.s32.totalorder %s18, 1
    %p113 = por %p111, %p112
    %p114 = scmp.ne.s32.totalorder %s105, %s106
    %p115 = scmp.eq.s32.totalorder %s18, 0
    %p116 = por %p114, %p115
    %p117 = scmp.ne.s32.totalorder %s105, %s106
    %p118 = scmp.eq.s32.totalorder %s19, 1
    %p119 = por %p117, %p118
    %p121 = scmp.ne.s32.totalorder %s106, %s120
    %p122 = scmp.eq.s32.totalorder %s19, 0
    %p123 = por %p121, %p122
    %s125 = sadd.s32 %s124, 1
    %p128 = scmp.eq.s32.totalorder %s13, 1
    %p129 = scmp.ne.s32.totalorder %s124, %s126
    %p130 = scmp.eq.s32.totalorder %s13, 0
    %p131 = por %p129, %p130
    %p132 = scmp.ne.s32.totalorder %s124, %s126
    %p133 = scmp.eq.s32.totalorder %s18, 1
    %p134 = por %p132, %p133
    %p135 = scmp.ne.s32.totalorder %s126, %s127
    %p136 = scmp.eq.s32.totalorder %s18, 0
    %p137 = por %p135, %p136
    %p138 = scmp.ne.s32.totalorder %s126, %s127
    %p139 = scmp.eq.s32.totalorder %s19, 1
    %p140 = por %p138, %p139
    %p142 = scmp.ne.s32.totalorder %s127, %s141
    %p143 = scmp.eq.s32.totalorder %s19, 0
    %p144 = por %p142, %p143
    %s146 = sadd.s32 %s145, 1
    %p149 = scmp.eq.s32.totalorder %s13, 1
    %p150 = scmp.ne.s32.totalorder %s145, %s147
    %p151 = scmp.eq.s32.totalorder %s13, 0
    %p152 = por %p150, %p151
    %p153 = scmp.ne.s32.totalorder %s145, %s147
    %p154 = scmp.eq.s32.totalorder %s18, 1
    %p155 = por %p153, %p154
    %p156 = scmp.ne.s32.totalorder %s147, %s148
    %p157 = scmp.eq.s32.totalorder %s18, 0
    %p158 = por %p156, %p157
    %p159 = scmp.ne.s32.totalorder %s147, %s148
    %p160 = scmp.eq.s32.totalorder %s19, 1
    %p161 = por %p159, %p160
    %p163 = scmp.ne.s32.totalorder %s148, %s162
    %p164 = scmp.eq.s32.totalorder %s19, 0
    %p165 = por %p163, %p164
    %s167 = sadd.s32 %s166, 1
    %p170 = scmp.eq.s32.totalorder %s13, 1
    %p171 = scmp.ne.s32.totalorder %s166, %s168
    %p172 = scmp.eq.s32.totalorder %s13, 0
    %p173 = por %p171, %p172
    %p174 = scmp.ne.s32.totalorder %s166, %s168
    %p175 = scmp.eq.s32.totalorder %s18, 1
    %p176 = por %p174, %p175
    %p177 = scmp.ne.s32.totalorder %s168, %s169
    %p178 = scmp.eq.s32.totalorder %s18, 0
    %p179 = por %p177, %p178
    %p180 = scmp.ne.s32.totalorder %s168, %s169
    %p181 = scmp.eq.s32.totalorder %s19, 1
    %p182 = por %p180, %p181
    %p184 = scmp.ne.s32.totalorder %s169, %s183
    %p185 = scmp.eq.s32.totalorder %s19, 0
    %p186 = por %p184, %p185
    %s187 = ssub.s32 %s20, %s32
    %s188 = ssub.s32 %s21, %s28
    %s189 = sor.u32 %s187, %s188
    %p190 = scmp.eq.s32.totalorder %s189, 0
    %s192 = sadd.s32 %s191, 1
    %s193 = scalar_select %p190, %s191, %s192
    %p196 = pneg %p190
    %p197 = scmp.eq.s32.totalorder %s13, 1
    %p198 = por %p196, %p197
    %p199 = scmp.ne.s32.totalorder %s191, %s194
    %p200 = scmp.eq.s32.totalorder %s13, 0
    %p201 = por %p199, %p200
    %p202 = scmp.ne.s32.totalorder %s191, %s194
    %p203 = scmp.eq.s32.totalorder %s18, 1
    %p204 = por %p202, %p203
    %p205 = scmp.ne.s32.totalorder %s194, %s195
    %p206 = scmp.eq.s32.totalorder %s18, 0
    %p207 = por %p205, %p206
    %p208 = scmp.ne.s32.totalorder %s194, %s195
    %p209 = scmp.eq.s32.totalorder %s19, 1
    %p210 = por %p208, %p209
    %p212 = scmp.ne.s32.totalorder %s195, %s211
    %p213 = scmp.eq.s32.totalorder %s19, 0
    %p214 = por %p212, %p213
    %p215 = scmp.le.s32.totalorder 1, %s13
    %p216 = scmp.lt.s32.totalorder %s13, 3
    %p217 = pnand %p215, %p216
    %p218 = pneg %p217
    // Predicated region
    $region9: #{nested_forward.1} parent=5 // pred_check
      _
    $region10: #{nested_forward.1} parent=5 // pred_check_branch
      %220 = sbr.rel (%p217) target = $region12
    $region11: #{nested_forward.1} parent=5 // pred_region
      %s221 = ssub.s32 %s13, 1
      // Predicated region
      $region13: #{nested_forward.1} parent=11 // pred_check
        %p222 = pneg %p74
      $region14: #{nested_forward.1} parent=11 // pred_check_branch
        %224 = sbr.rel (%p222) target = $region16
      $region15: #{nested_forward.1} parent=11 // pred_region
        _
      $region16: #{nested_forward.1} parent=11 // pred_fallthru
        _
      // Predicated region
      $region17: #{nested_forward.1} parent=11 // pred_check
        %p225 = pneg %p95
      $region18: #{nested_forward.1} parent=11 // pred_check_branch
        %227 = sbr.rel (%p225) target = $region20
      $region19: #{nested_forward.1} parent=11 // pred_region
        _
      $region20: #{nested_forward.1} parent=11 // pred_fallthru
        _
      // Predicated region
      $region21: #{nested_forward.1} parent=11 // pred_check
        %p228 = pneg %p116
      $region22: #{nested_forward.1} parent=11 // pred_check_branch
        %230 = sbr.rel (%p228) target = $region24
      $region23: #{nested_forward.1} parent=11 // pred_region
        _
      $region24: #{nested_forward.1} parent=11 // pred_fallthru
        _
      // Predicated region
      $region25: #{nested_forward.1} parent=11 // pred_check
        %p231 = pneg %p137
      $region26: #{nested_forward.1} parent=11 // pred_check_branch
        %233 = sbr.rel (%p231) target = $region28
      $region27: #{nested_forward.1} parent=11 // pred_region
        _
      $region28: #{nested_forward.1} parent=11 // pred_fallthru
        _
      // Predicated region
      $region29: #{nested_forward.1} parent=11 // pred_check
        %p234 = pneg %p158
      $region30: #{nested_forward.1} parent=11 // pred_check_branch
        %236 = sbr.rel (%p234) target = $region32
      $region31: #{nested_forward.1} parent=11 // pred_region
        _
      $region32: #{nested_forward.1} parent=11 // pred_fallthru
        _
      // Predicated region
      $region33: #{nested_forward.1} parent=11 // pred_check
        %p237 = pneg %p179
      $region34: #{nested_forward.1} parent=11 // pred_check_branch
        %239 = sbr.rel (%p237) target = $region36
      $region35: #{nested_forward.1} parent=11 // pred_region
        _
      $region36: #{nested_forward.1} parent=11 // pred_fallthru
        _
    $region12: #{nested_forward.1} parent=5 // pred_fallthru
      _
    %p240 = scmp.lt.s32.totalorder %s13, 2
    // Predicated region
    $region37: #{nested_forward.1} parent=5 // pred_check
      %p241 = pneg %p240
    $region38: #{nested_forward.1} parent=5 // pred_check_branch
      %243 = sbr.rel (%p241) target = $region40
    $region39: #{nested_forward.1} parent=5 // pred_region
      // Predicated region
      $region41: #{nested_forward.1} parent=39 // pred_check
        %p244 = pneg %p47
      $region42: #{nested_forward.1} parent=39 // pred_check_branch
        %246 = sbr.rel (%p244) target = $region44
      $region43: #{nested_forward.1} parent=39 // pred_region
        %s247 = smul.u32 2, %s21
        %p248 = scmp.lt.s32.totalorder %s20, 1
        %s249 = scalar_select %p248, %s20, 1
        %p250 = scmp.lt.s32.totalorder %s247, 1
        %s251 = scalar_select %p250, %s247, 1
        %s252 = smul.addr %s249, 2
        %s253 = sadd.s32 %s251, %s252
        %s254 = smul.addr %s253, 4
        %s255 = scalar_lea.vmem %s0, %s254
        %s256 = smul.u32 2, %s21
      $region44: #{nested_forward.1} parent=39 // pred_fallthru
        _
    $region40: #{nested_forward.1} parent=5 // pred_fallthru
      _
    %p257 = scmp.le.s32.totalorder 1, %s13
    %p258 = scmp.lt.s32.totalorder %s13, 3
    %p259 = pnand %p257, %p258
    %p260 = pneg %p259
    // Predicated region
    $region45: #{nested_forward.1} parent=5 // pred_check
      _
    $region46: #{nested_forward.1} parent=5 // pred_check_branch
      %262 = sbr.rel (%p259) target = $region48
    $region47: #{nested_forward.1} parent=5 // pred_region
      %s263 = ssub.s32 %s13, 1
      %s264 = smul.u32 2, %s23
      %p265 = scmp.lt.s32.totalorder %s22, 1
      %s266 = scalar_select %p265, %s22, 1
      %p267 = scmp.lt.s32.totalorder %s264, 1
      %s268 = scalar_select %p267, %s264, 1
      %s269 = smul.addr %s266, 2
      %s270 = sadd.s32 %s268, %s269
      %s271 = smul.addr %s270, 4
      %s272 = scalar_lea.vmem %s0, %s271
      %p273 = pneg %p53
      %p274 = pneg %p50
      %p275 = pneg %p74
      %p276 = pneg %p71
      %p277 = pneg %p95
      %p278 = pneg %p92
      %p279 = pneg %p116
      %p280 = pneg %p113
      %p281 = pneg %p137
      %p282 = pneg %p134
      %p283 = pneg %p158
      %p284 = pneg %p155
      %p285 = pneg %p179
      %p286 = pneg %p176
      %p287 = pneg %p207
      %p288 = pneg %p204
      %s289 = smul.u32 2, %s23
      %p290 = scmp.lt.s32.totalorder %s22, 1
      %s291 = scalar_select %p290, %s22, 1
      %p292 = scmp.lt.s32.totalorder %s289, 1
      %s293 = scalar_select %p292, %s289, 1
      %s294 = smul.addr %s291, 2
      %s295 = sadd.s32 %s293, %s294
      %s296 = smul.addr %s295, 4
      %s297 = scalar_lea.vmem %s7, %s296
      %s298 = smul.u32 2, %s23
      %p299 = scmp.lt.s32.totalorder %s22, 1
      %s300 = scalar_select %p299, %s22, 1
      %p301 = scmp.lt.s32.totalorder %s298, 1
      %s302 = scalar_select %p301, %s298, 1
      %s303 = smul.addr %s300, 2
      %s304 = sadd.s32 %s302, %s303
      %s305 = smul.addr %s304, 4
      %s306 = scalar_lea.vmem %s0, %s305
      %s307 = smul.u32 2, %s23
      %s308 = smul.u32 2, %s23
      %p309 = scmp.lt.s32.totalorder %s22, 1
      %s310 = scalar_select %p309, %s22, 1
      %p311 = scmp.lt.s32.totalorder %s308, 1
      %s312 = scalar_select %p311, %s308, 1
      %s313 = smul.addr %s310, 2
      %s314 = sadd.s32 %s312, %s313
      %s315 = smul.addr %s314, 4
      %s316 = scalar_lea.vmem %s7, %s315
      %s317 = smul.u32 2, %s23
      %v318 = vld [vmem:[%s306] sm:$0xff]
      %v319 = vld [vmem:[%s1] sm:$0xff]
      %v320 = vld [vmem:[%s2] sm:$0xff]
      %322 = vset.pattern.permute.xlu0 0
      %323 = vperm.xlu0 %322, %v320
      %v324 = vpop.permute.xlu0 %323
      %v327 = vcombine.high %v318, %v318
      %vm328 = vcmask 31744
      %v330 = vsel %vm328, %v319, 0
      %vm332 = vcmask 1043456
      %v333 = vsel %vm332, %v318, 0
      %v335 = vsel %vm332, %v327, 0
      %337 = vmatprep.subr.mxu0 0.0
      %338 = vmatpush1.msra.mxu0 0.0
      %339 = vmatprep.subr.mxu0 0.0
      %340 = vmatpush1.msra.mxu0 0.0
      %341 = vmatprep.subr.mxu0 0.0
      %342 = vmatpush1.msra.mxu0 0.0
      %343 = vmatprep.subr.mxu0 0.0
      %344 = vmatpush1.msra.mxu0 0.0
      %345 = vmatprep.subr.mxu0 0.0
      %346 = vmatpush1.msra.mxu0 0.0
      %347 = vmatprep.subr.mxu0 0.0
      %348 = vmatpush1.msra.mxu0 0.0
      %349 = vmatprep.subr.mxu0 0.0
      %350 = vmatpush1.msra.mxu0 0.0
      %351 = vmatprep.subr.mxu0 0.0
      %352 = vmatpush1.msra.mxu0 0.0
      %353 = vmatprep.subr.mxu0 0.0
      %354 = vmatpush1.msra.mxu0 0.0
      %355 = vmatprep.subr.mxu0 0.0
      %356 = vmatpush1.msra.mxu0 0.0
      %357 = vmatprep.subr.mxu0 0.0
      %358 = vmatpush1.msra.mxu0 0.0
      %359 = vmatprep.subr.mxu0 0.0
      %360 = vmatpush1.msra.mxu0 0.0
      %361 = vmatprep.subr.mxu0 0.0
      %362 = vmatpush1.msra.mxu0 0.0
      %363 = vmatprep.subr.mxu0 0.0
      %364 = vmatpush1.msra.mxu0 0.0
      %365 = vmatprep.subr.mxu0 0.0
      %366 = vmatpush1.msra.mxu0 0.0
      %367 = vmatprep.subr.mxu0 %v335
      %368 = vmatpush1.msra.mxu0 %v333
      %369 = vmatprep.subr.mxu0 0.0
      %370 = vmatpush2.msra.mxu0 0.0
      %371 = vmatprep.subr.mxu0 0.0
      %372 = vmatpush2.msra.mxu0 0.0
      %373 = vmatprep.subr.mxu0 0.0
      %374 = vmatpush2.msra.mxu0 0.0
      %375 = vmatprep.subr.mxu0 0.0
      %376 = vmatpush2.msra.mxu0 0.0
      %377 = vmatprep.subr.mxu0 0.0
      %378 = vmatpush2.msra.mxu0 0.0
      %379 = vmatprep.subr.mxu0 0.0
      %380 = vmatpush2.msra.mxu0 0.0
      %381 = vmatprep.subr.mxu0 0.0
      %382 = vmatpush2.msra.mxu0 0.0
      %383 = vmatprep.subr.mxu0 0.0
      %384 = vmatpush2.msra.mxu0 0.0
      %385 = vmatprep.subr.mxu0 0.0
      %386 = vmatpush2.msra.mxu0 0.0
      %387 = vmatprep.subr.mxu0 0.0
      %388 = vmatpush2.msra.mxu0 0.0
      %389 = vmatprep.subr.mxu0 0.0
      %390 = vmatpush2.msra.mxu0 0.0
      %391 = vmatprep.subr.mxu0 0.0
      %392 = vmatpush2.msra.mxu0 0.0
      %393 = vmatprep.subr.mxu0 0.0
      %394 = vmatpush2.msra.mxu0 0.0
      %395 = vmatprep.subr.mxu0 0.0
      %396 = vmatpush2.msra.mxu0 0.0
      %397 = vmatprep.subr.mxu0 0.0
      %398 = vmatpush2.msra.mxu0 0.0
      %399 = vmatprep.subr.mxu0 0.0
      %400 = vmatpush2.msra.mxu0 0.0
      %401 = vmatprep.mubr.f32.mxu0 0.0
      %402 = vmatmul.mubr.f32.gmra.mxu0 %v330
      %v403 = vpop.f32.mrf.mxu0
      %v404 = vadd.f32 %v324, %v403
      %v405 = vpop.f32.mrf.mxu0
      %v406 = vadd.f32 %v324, %v405
      %407 = vdwg.mxu0
      %v408 = vmax.f32 %v404, 0.0
      %v409 = vmax.f32 %v406, 0.0
      %v410 = vld [vmem:[%s3] sm:$0xff]
      %v411 = vld [vmem:[%s4] sm:$0xff]
      %413 = vset.pattern.permute.xlu0 0
      %414 = vperm.xlu0 %413, %v411
      %v415 = vpop.permute.xlu0 %414
      %vm417 = vcmask 64512
      %v419 = vsel %vm417, %v410, 0
      %421 = vmatprep.subr.mxu0 0.0
      %422 = vmatpush1.msra.mxu0 0.0
      %423 = vmatprep.subr.mxu0 0.0
      %424 = vmatpush1.msra.mxu0 0.0
      %425 = vmatprep.subr.mxu0 0.0
      %426 = vmatpush1.msra.mxu0 0.0
      %427 = vmatprep.subr.mxu0 0.0
      %428 = vmatpush1.msra.mxu0 0.0
      %429 = vmatprep.subr.mxu0 0.0
      %430 = vmatpush1.msra.mxu0 0.0
      %431 = vmatprep.subr.mxu0 0.0
      %432 = vmatpush1.msra.mxu0 0.0
      %433 = vmatprep.subr.mxu0 0.0
      %434 = vmatpush1.msra.mxu0 0.0
      %435 = vmatprep.subr.mxu0 0.0
      %436 = vmatpush1.msra.mxu0 0.0
      %437 = vmatprep.subr.mxu0 0.0
      %438 = vmatpush1.msra.mxu0 0.0
      %439 = vmatprep.subr.mxu0 0.0
      %440 = vmatpush1.msra.mxu0 0.0
      %441 = vmatprep.subr.mxu0 0.0
      %442 = vmatpush1.msra.mxu0 0.0
      %443 = vmatprep.subr.mxu0 0.0
      %444 = vmatpush1.msra.mxu0 0.0
      %445 = vmatprep.subr.mxu0 0.0
      %446 = vmatpush1.msra.mxu0 0.0
      %447 = vmatprep.subr.mxu0 0.0
      %448 = vmatpush1.msra.mxu0 0.0
      %449 = vmatprep.subr.mxu0 0.0
      %450 = vmatpush1.msra.mxu0 0.0
      %451 = vmatprep.subr.mxu0 %v409
      %452 = vmatpush1.msra.mxu0 %v408
      %453 = vmatprep.subr.mxu0 0.0
      %454 = vmatpush2.msra.mxu0 0.0
      %455 = vmatprep.subr.mxu0 0.0
      %456 = vmatpush2.msra.mxu0 0.0
      %457 = vmatprep.subr.mxu0 0.0
      %458 = vmatpush2.msra.mxu0 0.0
      %459 = vmatprep.subr.mxu0 0.0
      %460 = vmatpush2.msra.mxu0 0.0
      %461 = vmatprep.subr.mxu0 0.0
      %462 = vmatpush2.msra.mxu0 0.0
      %463 = vmatprep.subr.mxu0 0.0
      %464 = vmatpush2.msra.mxu0 0.0
      %465 = vmatprep.subr.mxu0 0.0
      %466 = vmatpush2.msra.mxu0 0.0
      %467 = vmatprep.subr.mxu0 0.0
      %468 = vmatpush2.msra.mxu0 0.0
      %469 = vmatprep.subr.mxu0 0.0
      %470 = vmatpush2.msra.mxu0 0.0
      %471 = vmatprep.subr.mxu0 0.0
      %472 = vmatpush2.msra.mxu0 0.0
      %473 = vmatprep.subr.mxu0 0.0
      %474 = vmatpush2.msra.mxu0 0.0
      %475 = vmatprep.subr.mxu0 0.0
      %476 = vmatpush2.msra.mxu0 0.0
      %477 = vmatprep.subr.mxu0 0.0
      %478 = vmatpush2.msra.mxu0 0.0
      %479 = vmatprep.subr.mxu0 0.0
      %480 = vmatpush2.msra.mxu0 0.0
      %481 = vmatprep.subr.mxu0 0.0
      %482 = vmatpush2.msra.mxu0 0.0
      %483 = vmatprep.subr.mxu0 0.0
      %484 = vmatpush2.msra.mxu0 0.0
      %485 = vmatprep.mubr.f32.mxu0 0.0
      %486 = vmatmul.mubr.f32.gmra.mxu0 %v419
      %v487 = vpop.f32.mrf.mxu0
      %v488 = vadd.f32 %v415, %v487
      %v489 = vpop.f32.mrf.mxu0
      %v490 = vadd.f32 %v415, %v489
      %491 = vdwg.mxu0
      %v492 = vmax.f32 %v488, 0.0
      %v493 = vmax.f32 %v490, 0.0
      %v494 = vld [vmem:[%s5] sm:$0xf]
      %v495 = vld [vmem:[%s6] sm:$0xf]
      %497 = vset.pattern.permute.xlu0 0
      %498 = vperm.xlu0 %497, %v495
      %v499 = vpop.permute.xlu0 %498
      %v502 = vsel %vm417, %v494, 0
      %504 = vmatprep.subr.mxu0 0.0
      %505 = vmatpush1.msra.mxu0 0.0
      %506 = vmatprep.subr.mxu0 0.0
      %507 = vmatpush1.msra.mxu0 0.0
      %508 = vmatprep.subr.mxu0 0.0
      %509 = vmatpush1.msra.mxu0 0.0
      %510 = vmatprep.subr.mxu0 0.0
      %511 = vmatpush1.msra.mxu0 0.0
      %512 = vmatprep.subr.mxu0 0.0
      %513 = vmatpush1.msra.mxu0 0.0
      %514 = vmatprep.subr.mxu0 0.0
      %515 = vmatpush1.msra.mxu0 0.0
      %516 = vmatprep.subr.mxu0 0.0
      %517 = vmatpush1.msra.mxu0 0.0
      %518 = vmatprep.subr.mxu0 0.0
      %519 = vmatpush1.msra.mxu0 0.0
      %520 = vmatprep.subr.mxu0 0.0
      %521 = vmatpush1.msra.mxu0 0.0
      %522 = vmatprep.subr.mxu0 0.0
      %523 = vmatpush1.msra.mxu0 0.0
      %524 = vmatprep.subr.mxu0 0.0
      %525 = vmatpush1.msra.mxu0 0.0
      %526 = vmatprep.subr.mxu0 0.0
      %527 = vmatpush1.msra.mxu0 0.0
      %528 = vmatprep.subr.mxu0 0.0
      %529 = vmatpush1.msra.mxu0 0.0
      %530 = vmatprep.subr.mxu0 0.0
      %531 = vmatpush1.msra.mxu0 0.0
      %532 = vmatprep.subr.mxu0 0.0
      %533 = vmatpush1.msra.mxu0 0.0
      %534 = vmatprep.subr.mxu0 %v493
      %535 = vmatpush1.msra.mxu0 %v492
      %536 = vmatprep.subr.mxu0 0.0
      %537 = vmatpush2.msra.mxu0 0.0
      %538 = vmatprep.subr.mxu0 0.0
      %539 = vmatpush2.msra.mxu0 0.0
      %540 = vmatprep.subr.mxu0 0.0
      %541 = vmatpush2.msra.mxu0 0.0
      %542 = vmatprep.subr.mxu0 0.0
      %543 = vmatpush2.msra.mxu0 0.0
      %544 = vmatprep.subr.mxu0 0.0
      %545 = vmatpush2.msra.mxu0 0.0
      %546 = vmatprep.subr.mxu0 0.0
      %547 = vmatpush2.msra.mxu0 0.0
      %548 = vmatprep.subr.mxu0 0.0
      %549 = vmatpush2.msra.mxu0 0.0
      %550 = vmatprep.subr.mxu0 0.0
      %551 = vmatpush2.msra.mxu0 0.0
      %552 = vmatprep.subr.mxu0 0.0
      %553 = vmatpush2.msra.mxu0 0.0
      %554 = vmatprep.subr.mxu0 0.0
      %555 = vmatpush2.msra.mxu0 0.0
      %556 = vmatprep.subr.mxu0 0.0
      %557 = vmatpush2.msra.mxu0 0.0
      %558 = vmatprep.subr.mxu0 0.0
      %559 = vmatpush2.msra.mxu0 0.0
      %560 = vmatprep.subr.mxu0 0.0
      %561 = vmatpush2.msra.mxu0 0.0
      %562 = vmatprep.subr.mxu0 0.0
      %563 = vmatpush2.msra.mxu0 0.0
      %564 = vmatprep.subr.mxu0 0.0
      %565 = vmatpush2.msra.mxu0 0.0
      %566 = vmatprep.subr.mxu0 0.0
      %567 = vmatpush2.msra.mxu0 0.0
      %568 = vmatprep.mubr.f32.mxu0 0.0
      %569 = vmatmul.mubr.f32.gmra.mxu0 %v502
      %v570 = vpop.f32.mrf.mxu0
      %v571 = vadd.f32 %v499, %v570
      %v572 = vpop.f32.mrf.mxu0
      %v573 = vadd.f32 %v499, %v572
      %574 = vdwg.mxu0
      %v576 = vadd.f32 %v571, %v318
      %v577 = vadd.f32 %v573, %v327
      %v578 = vmax.f32 %v576, 0.0
      %v579 = vmax.f32 %v577, 0.0
      %v582 = vcombine.low %v578, %v579
      %584 = vst [vmem:[%s316] sm:$0xff] %v582
      %s585 = smul.u32 2, %s23
      %p586 = scmp.lt.s32.totalorder %s22, 1
      %s587 = scalar_select %p586, %s22, 1
      %p588 = scmp.lt.s32.totalorder %s585, 1
      %s589 = scalar_select %p588, %s585, 1
      %s590 = smul.addr %s587, 2
      %s591 = sadd.s32 %s589, %s590
      %s592 = smul.addr %s591, 4
      %s593 = scalar_lea.vmem %s7, %s592
      // Predicated region
      $region49: #{nested_forward.1} parent=47 // pred_check
        %p594 = pneg %p204
      $region50: #{nested_forward.1} parent=47 // pred_check_branch
        %596 = sbr.rel (%p594) target = $region52
      $region51: #{nested_forward.1} parent=47 // pred_region
        %s597 = smul.u32 2, %s23
      $region52: #{nested_forward.1} parent=47 // pred_fallthru
        _
    $region48: #{nested_forward.1} parent=5 // pred_fallthru
      _
    %p598 = scmp.le.s32.totalorder 2, %s13
    // Predicated region
    $region53: #{nested_forward.1} parent=5 // pred_check
      %p599 = pneg %p598
    $region54: #{nested_forward.1} parent=5 // pred_check_branch
      %601 = sbr.rel (%p599) target = $region56
    $region55: #{nested_forward.1} parent=5 // pred_region
      %s602 = ssub.s32 %s13, 2
      // Predicated region
      $region57: #{nested_forward.1} parent=55 // pred_check
        %p603 = pneg %p210
      $region58: #{nested_forward.1} parent=55 // pred_check_branch
        %605 = sbr.rel (%p603) target = $region60
      $region59: #{nested_forward.1} parent=55 // pred_region
        %s606 = smul.u32 2, %s25
        %p607 = scmp.lt.s32.totalorder %s24, 1
        %s608 = scalar_select %p607, %s24, 1
        %p609 = scmp.lt.s32.totalorder %s606, 1
        %s610 = scalar_select %p609, %s606, 1
        %s611 = smul.addr %s608, 2
        %s612 = sadd.s32 %s610, %s611
        %s613 = smul.addr %s612, 4
        %s614 = scalar_lea.vmem %s7, %s613
      $region60: #{nested_forward.1} parent=55 // pred_fallthru
        _
    $region56: #{nested_forward.1} parent=5 // pred_fallthru
      _
  $region6: #{nested_forward.1} parent=0 // loop_footer
    %s17 = sadd.s32 1, %s13
  $region7: #{nested_forward.1} parent=0 // loop_footer_branch
    %12 = sbr.rel target = $region3
  $region8: #{nested_forward.1} parent=0 // loop_exit
    _

</llo_original>
